<compile_context>
chip_gen: v7x
topology: tpu7x:2x2x1
jax: 0.10.0
libtpu: 0.0.40
codegen_flags: <defaults>
</compile_context>

<pallas_src>
import jax
import jax.numpy as jnp
from jax.experimental import pallas as pl
from jax.experimental.pallas import tpu as pltpu


# --------------------------------------------------------------------------
# kernels
# --------------------------------------------------------------------------
def _store_batches(out_ref, pos):
    # Unrolled per-batch stores of the same vregs: avoids materializing a
    # (TB, TH, ...) broadcast temp / relayout before the store.
    for i in range(out_ref.shape[0]):
        out_ref[i] = pos


def _pos_kernel_4d(x_ref, y_ref, out_ref, pos_ref):
    # x_ref:   (1, W, D)   column-embedding half (zeros in row channels)
    # y_ref:   (TH, 1, D)  row-embedding half   (zeros in column channels)
    # out_ref: (TB, TH, W, D)
    # pos_ref: VMEM scratch (TH, W, D)
    #
    # Batch is the inner ("arbitrary") grid axis, so the batch-invariant add
    # runs exactly once per H tile; all remaining steps are pure vld + vst.
    @pl.when(pl.program_id(1) == 0)
    def _():
        pos_ref[...] = (x_ref[...] + y_ref[...]).astype(pos_ref.dtype)

    _store_batches(out_ref, pos_ref[...])


def _pos_kernel_flat(pos_ref, out_ref):
    # pos_ref: (TH, W*D) precomputed position tile;  out_ref: (TB, TH, W*D)
    _store_batches(out_ref, pos_ref[...])


# --------------------------------------------------------------------------
# tiling helpers
# --------------------------------------------------------------------------
def _vmem_capacity_bytes():
    try:
        return int(pltpu.get_tpu_info().vmem_capacity_bytes)
    except Exception:
        return 64 << 20  # conservative default: v7x per-TensorCore VMEM


def _choose_tiles(B, H, W, D, itemsize, granularity, budget):
    """Pick (TB, TH) so the (TB, TH, W, D) output block fits `budget` bytes,
    TH respects the packed-sublane granularity (needed when TH is the
    second-to-last block dim in the flattened path), and there are >= 2 H
    tiles whenever H >= 2 so dual-TensorCore chips split the write stream.
    TH does NOT need to divide H (Pallas clips the partial last block)."""
    TB = min(B, 8)
    row_bytes = W * D * itemsize
    min_rows = min(H, granularity)

    def rows_fitting(tb):
        return max(1, budget // max(1, tb * row_bytes))

    # Shrink TB first if even a minimal H tile would blow the budget.
    while TB > 1 and rows_fitting(TB) < min_rows:
        TB = max(1, TB // 2)

    TH = min(H, rows_fitting(TB))
    if H >= 2:                                   # >= 2 H tiles -> megacore split
        TH = min(TH, pl.cdiv(H, 2))
    if TH < H:
        # Keep the packed-sublane granularity (8 f32 / 16 bf16 / 32 int8) so
        # stores stay unmasked in the flattened layout; full-extent TH == H is
        # always legal and handled above.
        TH = max(min(H, granularity), (TH // granularity) * granularity)
    return TB, TH


# --------------------------------------------------------------------------
# wrapper
# --------------------------------------------------------------------------
def learned_abs_pos_embedding_2d(pixel_values, row_table, col_table):
    """Forward of LearnedAbsolutePositionEmbedding2D.

    pixel_values: (B, H, W, C); returns (B, H, W, D), D = Dr + Dc.
    Output dtype follows the embedding-table dtype (bf16 tables -> bf16 out).
    """
    if pixel_values.ndim != 4:
        raise ValueError("pixel_values must be a 4D tensor")
    if row_table.dtype != col_table.dtype:
        raise ValueError("row/column embedding tables must share a dtype")
    B, H, W, _ = pixel_values.shape
    num_pos_r, Dr = row_table.shape
    num_pos_c, Dc = col_table.shape
    if H > num_pos_r or W > num_pos_c:
        raise ValueError(f"spatial size ({H}, {W}) exceeds embedding capacity "
                         f"({num_pos_r}, {num_pos_c})")
    D = Dr + Dc
    dt = row_table.dtype
    itemsize = jnp.dtype(dt).itemsize

    # nn.Embedding(arange(n)) == static slice of the table (done in glue).
    x_emb = col_table[:W]                                   # (W, Dc)
    y_emb = row_table[:H]                                   # (H, Dr)

    vmem_cap = _vmem_capacity_bytes()
    # Generation-aware output-block budget: v7x (64 MiB/TC) -> ~4 MiB blocks,
    # v5e/v6e (128 MiB) -> ~8 MiB blocks (amortizes the ~0.35 us/step cost).
    budget = (4 << 20) if vmem_cap <= (64 << 20) else (8 << 20)

    if D % 128 == 0:
        # ---------------- lane-multiple D: direct (B, H, W, D) path ----------
        TB, TH = _choose_tiles(B, H, W, D, itemsize, 1, budget)
        nb, nh = pl.cdiv(B, TB), pl.cdiv(H, TH)

        x_half = jnp.concatenate([x_emb, jnp.zeros((W, Dr), dt)], axis=-1)[None]       # (1, W, D)
        y_half = jnp.concatenate([jnp.zeros((H, Dc), dt), y_emb], axis=-1)[:, None, :]  # (H, 1, D)

        out_block = TB * TH * W * D * itemsize
        needed = (2 * out_block                      # double-buffered output
                  + TH * W * D * itemsize            # pos scratch
                  + 2 * (W * D + TH * D) * itemsize)  # double-buffered inputs
        vmem_limit = int(min(vmem_cap, max(needed + (8 << 20), 16 << 20)))

        cost = pl.CostEstimate(
            flops=H * W * D, transcendentals=0,
            bytes_accessed=(B * H * W * D + H * D + W * D) * itemsize)

        return pl.pallas_call(
            _pos_kernel_4d,
            out_shape=jax.ShapeDtypeStruct((B, H, W, D), dt),
            grid_spec=pltpu.PrefetchScalarGridSpec(
                num_scalar_prefetch=0,
                grid=(nh, nb),                       # batch innermost: pos reuse
                in_specs=[
                    pl.BlockSpec((1, W, D), lambda h, b: (0, 0, 0)),
                    pl.BlockSpec((TH, 1, D), lambda h, b: (h, 0, 0)),
                ],
                out_specs=pl.BlockSpec((TB, TH, W, D), lambda h, b: (b, h, 0, 0)),
                scratch_shapes=[pltpu.VMEM((TH, W, D), dt)],
            ),
            compiler_params=pltpu.CompilerParams(
                # Batch must be sequential so the b == 0 guard that fills the
                # pos scratch always runs before the reuse steps on each core;
                # the H axis (always >= 2 tiles when H >= 2) carries megacore.
                dimension_semantics=("parallel", "arbitrary"),
                vmem_limit_bytes=vmem_limit,
            ),
            cost_estimate=cost,
        )(x_half, y_half)

    # ---------------- fallback (D not a lane multiple): lane-flattened -------
    granularity = {1: 32, 2: 16}.get(itemsize, 8)
    TB, TH = _choose_tiles(B, H, W, D, itemsize, granularity, budget)
    nb, nh = pl.cdiv(B, TB), pl.cdiv(H, TH)

    # Hoist the entire batch-invariant pos computation to glue (tiny here).
    pos = jnp.concatenate(
        [jnp.broadcast_to(x_emb[None, :, :], (H, W, Dc)),
         jnp.broadcast_to(y_emb[:, None, :], (H, W, Dr))], axis=-1)   # (H, W, D)
    pos_flat = pos.reshape(H, W * D)

    out_block = TB * TH * W * D * itemsize
    needed = 2 * out_block + 2 * TH * W * D * itemsize
    vmem_limit = int(min(vmem_cap, max(needed + (8 << 20), 16 << 20)))

    cost = pl.CostEstimate(
        flops=0, transcendentals=0,
        bytes_accessed=(B * H * W * D + H * W * D) * itemsize)

    out_flat = pl.pallas_call(
        _pos_kernel_flat,
        out_shape=jax.ShapeDtypeStruct((B, H, W * D), dt),
        grid_spec=pltpu.PrefetchScalarGridSpec(
            num_scalar_prefetch=0,
            grid=(nh, nb),
            in_specs=[pl.BlockSpec((TH, W * D), lambda h, b: (h, 0))],
            out_specs=pl.BlockSpec((TB, TH, W * D), lambda h, b: (b, h, 0)),
        ),
        compiler_params=pltpu.CompilerParams(
            dimension_semantics=("parallel", "parallel"),
            vmem_limit_bytes=vmem_limit,
        ),
        cost_estimate=cost,
    )(pos_flat)

    # Pure layout plumbing back to the module's (B, H, W, D) output.
    return out_flat.reshape(B, H, W, D)


# --------------------------------------------------------------------------
# demo / self-check
# --------------------------------------------------------------------------
def _reference(row_table, col_table, B, H, W):
    x_emb = col_table[:W]
    y_emb = row_table[:H]
    ref = jnp.concatenate(
        [jnp.broadcast_to(x_emb[None, :, :], (H, W, x_emb.shape[-1])),
         jnp.broadcast_to(y_emb[:, None, :], (H, W, y_emb.shape[-1]))], axis=-1)
    return jnp.broadcast_to(ref[None], (B,) + ref.shape)


if __name__ == "__main__":
    key = jax.random.PRNGKey(0)
    k_pix1, k_row1, k_col1, k_pix2, k_row2, k_col2 = jax.random.split(key, 6)

    # Test 1: tiny embedding_dim (lane-flattened fallback path), H % 8 != 0
    # exercises partial H blocks with a budgeted TH.
    B, H, W, C, Demb, num_pos = 2, 12, 16, 4, 32, 50
    pixel_values = jax.random.normal(k_pix1, (B, H, W, C), dtype=jnp.float32)
    row_table = jax.random.normal(k_row1, (num_pos, Demb // 2), dtype=jnp.float32)
    col_table = jax.random.normal(k_col1, (num_pos, Demb - Demb // 2), dtype=jnp.float32)

    out = jax.block_until_ready(
        learned_abs_pos_embedding_2d(pixel_values, row_table, col_table))
    ref = _reference(row_table, col_table, B, H, W)
    assert out.shape == (B, H, W, Demb), out.shape
    assert out.dtype == jnp.float32
    assert jnp.allclose(out, ref), "fallback (flattened) path mismatch"

    # Test 2: D % 128 == 0 (direct 4D path) with a partial last batch block
    # (B = 9 > TB = 8) and the pos-scratch reuse across batch blocks.
    B2, H2, W2, C2, Demb2, num_pos2 = 9, 16, 16, 4, 256, 64
    pixel_values2 = jax.random.normal(k_pix2, (B2, H2, W2, C2), dtype=jnp.float32)
    row_table2 = jax.random.normal(k_row2, (num_pos2, Demb2 // 2), dtype=jnp.float32)
    col_table2 = jax.random.normal(k_col2, (num_pos2, Demb2 - Demb2 // 2), dtype=jnp.float32)

    out2 = jax.block_until_ready(
        learned_abs_pos_embedding_2d(pixel_values2, row_table2, col_table2))
    ref2 = _reference(row_table2, col_table2, B2, H2, W2)
    assert out2.shape == (B2, H2, W2, Demb2), out2.shape
    assert out2.dtype == jnp.float32
    assert jnp.allclose(out2, ref2), "direct 4D path mismatch"

    print("KERNEL_OK")
</pallas_src>

<mosaic_0001>
module attributes {stable_mosaic.version = 11 : i64} {
  func.func @_pos_kernel_flat(%arg0: i32, %arg1: i32, %arg2: memref<8x512xf32, #tpu.memory_space<vmem>>, %arg3: memref<2x8x512xf32, #tpu.memory_space<vmem>>) attributes {dimension_semantics = [#tpu.dimension_semantics<parallel>, #tpu.dimension_semantics<parallel>], iteration_bounds = array<i64: 2, 1>, scalar_prefetch = 0 : i64, scratch_operands = 0 : i64, tpu.core_type = #tpu.core_type<tc>, window_params = [{transform_indices = @transform_0, window_bounds = array<i64: 8, 512>}, {transform_indices = @transform_1, window_bounds = array<i64: 2, 8, 512>}]} {
    %c0 = arith.constant 0 : index
    %c0_0 = arith.constant 0 : index
    %0 = vector.load %arg2[%c0, %c0_0] : memref<8x512xf32, #tpu.memory_space<vmem>>, vector<8x512xf32>
    %c0_1 = arith.constant 0 : index
    %c0_2 = arith.constant 0 : index
    %c0_3 = arith.constant 0 : index
    %1 = vector.load %arg3[%c0_1, %c0_2, %c0_3] : memref<2x8x512xf32, #tpu.memory_space<vmem>>, vector<1x8x512xf32>
    %2 = vector.shape_cast %1 : vector<1x8x512xf32> to vector<8x512xf32>
    %3 = vector.shape_cast %0 : vector<8x512xf32> to vector<1x8x512xf32>
    tpu.vector_store %arg3[%c0_1, %c0_2, %c0_3], %3 {strides = array<i32>} : memref<2x8x512xf32, #tpu.memory_space<vmem>>, vector<1x8x512xf32>,
    %c1 = arith.constant 1 : index
    %c0_4 = arith.constant 0 : index
    %c0_5 = arith.constant 0 : index
    %4 = vector.load %arg3[%c1, %c0_4, %c0_5] : memref<2x8x512xf32, #tpu.memory_space<vmem>>, vector<1x8x512xf32>
    %5 = vector.shape_cast %4 : vector<1x8x512xf32> to vector<8x512xf32>
    %6 = vector.shape_cast %0 : vector<8x512xf32> to vector<1x8x512xf32>
    tpu.vector_store %arg3[%c1, %c0_4, %c0_5], %6 {strides = array<i32>} : memref<2x8x512xf32, #tpu.memory_space<vmem>>, vector<1x8x512xf32>,
    return
  }
  func.func @transform_0(%arg0: i32, %arg1: i32) -> (i32, i32) {
    %c0_i32 = arith.constant 0 : i32
    %c0_i32_0 = arith.constant 0 : i32
    return %arg0, %c0_i32 : i32, i32
  }
  func.func @transform_1(%arg0: i32, %arg1: i32) -> (i32, i32, i32) {
    %c0_i32 = arith.constant 0 : i32
    %c0_i32_0 = arith.constant 0 : i32
    return %arg1, %arg0, %c0_i32 : i32, i32, i32
  }
}

</mosaic_0001>

<llo_original>
// kernel: tpu_custom_call.1
$region0: #{tpu_custom_call.1}
  #allocation0 [shape = 'u32[]', space=smem, size = 0x4, offset = 0x4, fixed_abs, tag = 'smem constant byte address 0x4 - core index']
  #allocation1 [shape = 'u32[144,128]{1,0:T(1,128)}', space=vmem, size = 0x12000, scoped, tag = 'internal scratch']
  %s0 = inlined_call_operand.hbm [shape: f32[12,512], index: 0, kind: input, shape index: {}]
  %s1 = inlined_call_operand.vmem [shape: f32[2,12,512], index: 1, kind: output, shape index: {}]
  %s2 = sld [smem:[#allocation0]]
  $region60: #{tpu_custom_call.1} parent=0
    _
  %s4 = ssub.s32 1, %s2
  %s5 = scalar_select 0, %s4, %s2
  $region1: #{tpu_custom_call.1} parent=0
    #allocation2 [shape = 'u8[32768]{0}', space=vmem, size = 0x8000, scoped, tag = 'input window, operand 0']
    #allocation3 [shape = 's32[2]{0}', space=sflag, size = 0x8, scoped, tag = 'scoped memory for tpu_custom_call.1']
    #allocation4 [shape = 'u8[65536]{0}', space=vmem, size = 0x10000, scoped, tag = 'output window, operand 0']
    %6 = vsyncpa [#allocation3], 0
    %s7 = scalar_lea.sflag [#allocation3], 1
    %8 = vsyncpa %s7, 0
    loop: start=0, step=1, limit=4
    $region2: #{tpu_custom_call.1} parent=1 // loop_pre_header
      _
    $region3: #{tpu_custom_call.1} parent=1 // loop_header
      %s10 = sphi 0, %s14
      %p11 = scmp.ge.s32.totalorder %s10, 4
      %s17 = sphi 0, %s29
      %s18 = sphi 0, %s25
      %s19 = sphi 0, %s17
      %s20 = sphi 0, %s18
      %s21 = sphi 0, %s19
      %s22 = sphi 0, %s20
      %s32 = sphi 0, %s34
      %s35 = sphi 0, %s32
      %s36 = sphi 0, %s35
      %s52 = sphi 0, %s36
      %s60 = sphi 0, %s62
      %s63 = sphi 0, %s60
      %s64 = sphi 0, %s63
      %s80 = sphi 0, %s64
    $region4: #{tpu_custom_call.1} parent=1 // loop_header_branch
      %13 = sbr.rel (%p11) target = $region8
    $region5: #{tpu_custom_call.1} parent=1 // loop_body
      %s15 = ssub.s32 %s10, 1
      %s16 = ssub.s32 %s10, 2
      %s23 = sadd.s32 1, %s18
      %p24 = scmp.ge.s32.totalorder %s23, 1
      %s25 = scalar_select %p24, 0, %s23
      %s26 = sadd.s32 1, %s17
      %s27 = scalar_select %p24, %s26, %s17
      %p28 = scmp.ge.s32.totalorder %s27, 2
      %s29 = scalar_select %p28, 0, %s27
      %s30 = ssub.s32 %s17, %s29
      %p31 = scmp.eq.s32.totalorder %s30, 0
      %s33 = sadd.s32 %s32, 1
      %s34 = scalar_select %p31, %s32, %s33
      %p37 = pneg %p31
      %p38 = scmp.eq.s32.totalorder %s10, 1
      %p39 = por %p37, %p38
      %p40 = scmp.ne.s32.totalorder %s32, %s35
      %p41 = scmp.eq.s32.totalorder %s10, 0
      %p42 = por %p40, %p41
      %p43 = scmp.ne.s32.totalorder %s32, %s35
      %p44 = scmp.eq.s32.totalorder %s15, 1
      %p45 = por %p43, %p44
      %p46 = scmp.ne.s32.totalorder %s35, %s36
      %p47 = scmp.eq.s32.totalorder %s15, 0
      %p48 = por %p46, %p47
      %p49 = scmp.ne.s32.totalorder %s35, %s36
      %p50 = scmp.eq.s32.totalorder %s16, 1
      %p51 = por %p49, %p50
      %p53 = scmp.ne.s32.totalorder %s36, %s52
      %p54 = scmp.eq.s32.totalorder %s16, 0
      %p55 = por %p53, %p54
      %s56 = ssub.s32 %s18, %s25
      %s57 = ssub.s32 %s17, %s29
      %s58 = sor.u32 %s56, %s57
      %p59 = scmp.eq.s32.totalorder %s58, 0
      %s61 = sadd.s32 %s60, 1
      %s62 = scalar_select %p59, %s60, %s61
      %p65 = pneg %p59
      %p66 = scmp.eq.s32.totalorder %s10, 1
      %p67 = por %p65, %p66
      %p68 = scmp.ne.s32.totalorder %s60, %s63
      %p69 = scmp.eq.s32.totalorder %s10, 0
      %p70 = por %p68, %p69
      %p71 = scmp.ne.s32.totalorder %s60, %s63
      %p72 = scmp.eq.s32.totalorder %s15, 1
      %p73 = por %p71, %p72
      %p74 = scmp.ne.s32.totalorder %s63, %s64
      %p75 = scmp.eq.s32.totalorder %s15, 0
      %p76 = por %p74, %p75
      %p77 = scmp.ne.s32.totalorder %s63, %s64
      %p78 = scmp.eq.s32.totalorder %s16, 1
      %p79 = por %p77, %p78
      %p81 = scmp.ne.s32.totalorder %s64, %s80
      %p82 = scmp.eq.s32.totalorder %s16, 0
      %p83 = por %p81, %p82
      %p84 = scmp.le.s32.totalorder 1, %s10
      %p85 = scmp.lt.s32.totalorder %s10, 3
      %p86 = pnand %p84, %p85
      %p87 = pneg %p86
      // Predicated region
      $region9: #{tpu_custom_call.1} parent=5 // pred_check
        _
      $region10: #{tpu_custom_call.1} parent=5 // pred_check_branch
        %89 = sbr.rel (%p86) target = $region12
      $region11: #{tpu_custom_call.1} parent=5 // pred_region
        %s90 = ssub.s32 %s10, 1
      $region12: #{tpu_custom_call.1} parent=5 // pred_fallthru
        _
      %p91 = scmp.lt.s32.totalorder %s10, 2
      // Predicated region
      $region13: #{tpu_custom_call.1} parent=5 // pred_check
        %p92 = pneg %p91
      $region14: #{tpu_custom_call.1} parent=5 // pred_check_branch
        %94 = sbr.rel (%p92) target = $region16
      $region15: #{tpu_custom_call.1} parent=5 // pred_region
        // Predicated region
        $region17: #{tpu_custom_call.1} parent=15 // pred_check
          %p95 = pneg %p42
        $region18: #{tpu_custom_call.1} parent=15 // pred_check_branch
          %97 = sbr.rel (%p95) target = $region20
        $region19: #{tpu_custom_call.1} parent=15 // pred_region
          %s98 = sand.u32 %s32, 1
          %s99 = scalar_lea.sflag [#allocation3], %s98
          %s100 = sand.u32 %s32, 1
          %s101 = smul.addr %s100, 32
          %s102 = scalar_lea.vmem [#allocation2], %s101
          %s104 = ssub.s32 512, 512
          %105 = vsyncadd %s99, %s104
          %s106 = smul.addr %s17, 4
          %s107 = smul.addr %s106, 128
          %s108 = scalar_lea.hbm %s0, %s107
          %s110 = sshll.u32 %s102, 4
          %s111 = int_to_ptr.vmem [resolvable:$true] %s110
          %113 = dma.hbm_to_vmem [thread:$0]  %s108, 512, %s111, %s99
        $region20: #{tpu_custom_call.1} parent=15 // pred_fallthru
          _
      $region16: #{tpu_custom_call.1} parent=5 // pred_fallthru
        _
      %p114 = scmp.le.s32.totalorder 1, %s10
      %p115 = scmp.lt.s32.totalorder %s10, 3
      %p116 = pnand %p114, %p115
      %p117 = pneg %p116
      // Predicated region
      $region21: #{tpu_custom_call.1} parent=5 // pred_check
        _
      $region22: #{tpu_custom_call.1} parent=5 // pred_check_branch
        %119 = sbr.rel (%p116) target = $region24
      $region23: #{tpu_custom_call.1} parent=5 // pred_region
        %s120 = ssub.s32 %s10, 1
        %s121 = sand.u32 %s35, 1
        %s122 = scalar_lea.sflag [#allocation3], %s121
        %s123 = sand.u32 %s35, 1
        %s124 = smul.addr %s123, 32
        %s125 = scalar_lea.vmem [#allocation2], %s124
        // Predicated region
        $region25: #{tpu_custom_call.1} parent=23 // pred_check
          %p126 = pneg %p48
        $region26: #{tpu_custom_call.1} parent=23 // pred_check_branch
          %128 = sbr.rel (%p126) target = $region28
        $region27: #{tpu_custom_call.1} parent=23 // pred_region
          %129 = dma.done %s122, 512
        $region28: #{tpu_custom_call.1} parent=23 // pred_fallthru
          _
        %s130 = sand.u32 %s35, 1
        %s131 = scalar_lea.sflag [#allocation3], %s130
        %s132 = sand.u32 %s35, 1
        %s133 = smul.addr %s132, 32
        %s134 = scalar_lea.vmem [#allocation2], %s133
        %p135 = pneg %p48
        %p136 = pneg %p45
        %p137 = pneg %p76
        %p138 = pneg %p73
        %s139 = sand.u32 %s63, 1
        %s140 = sand.u32 %s63, 1
        %s141 = smul.addr %s140, 64
        %s142 = scalar_lea.vmem [#allocation4], %s141
        %s143 = smul.u32 2, %s20
        %v144 = vld [vmem:[%s125] sm:$0xff]
        %v145 = vld [vmem:[%s125 + $0x8] sm:$0xff]
        %v146 = vld [vmem:[%s125 + $0x10] sm:$0xff]
        %v147 = vld [vmem:[%s125 + $0x18] sm:$0xff]
        %148 = vst [vmem:[%s142] sm:$0xff] %v144
        %149 = vst [vmem:[%s142 + $0x8] sm:$0xff] %v145
        %150 = vst [vmem:[%s142 + $0x10] sm:$0xff] %v146
        %151 = vst [vmem:[%s142 + $0x18] sm:$0xff] %v147
        %s152 = scalar_lea.vmem %s142, 32 [#allocation4]
        %153 = vst [vmem:[%s152] sm:$0xff] %v144
        %154 = vst [vmem:[%s152 + $0x8] sm:$0xff] %v145
        %155 = vst [vmem:[%s152 + $0x10] sm:$0xff] %v146
        %156 = vst [vmem:[%s152 + $0x18] sm:$0xff] %v147
        %s157 = sand.u32 %s63, 1
        %s158 = sand.u32 %s63, 1
        %s159 = smul.addr %s158, 64
        %s160 = scalar_lea.vmem [#allocation4], %s159
        // Predicated region
        $region29: #{tpu_custom_call.1} parent=23 // pred_check
          %p161 = pneg %p73
        $region30: #{tpu_custom_call.1} parent=23 // pred_check_branch
          %163 = sbr.rel (%p161) target = $region32
        $region31: #{tpu_custom_call.1} parent=23 // pred_region
          %s164 = smul.u32 2, %s20
          %s165 = smul.addr %s19, 4
          %s166 = smul.addr %s164, 8
          %s167 = sadd.s32 %s165, %s166
          %s168 = smul.addr %s167, 8
          %s169 = scalar_lea.vmem %s1, %s168
          // Predicated region
          $region33: #{tpu_custom_call.1} parent=31 // pred_check
            _
          $region34: #{tpu_custom_call.1} parent=31 // pred_check_branch
            %171 = sbr.rel (0) target = $region36
          $region35: #{tpu_custom_call.1} parent=31 // pred_region
            // Predicated region
            $region37: #{tpu_custom_call.1} parent=35 // pred_check
              _
            $region38: #{tpu_custom_call.1} parent=35 // pred_check_branch
              %173 = sbr.rel (0) target = $region40
            $region39: #{tpu_custom_call.1} parent=35 // pred_region
              loop: start=0, step=1, limit=1
              $region41: #{tpu_custom_call.1} parent=39 // loop_pre_header
                _
              $region42: #{tpu_custom_call.1} parent=39 // loop_header
                %s175 = sphi 0, %s179
                %p176 = scmp.ge.s32.totalorder %s175, 1
                %s180 = sphi %s160, %s160
                %s181 = sphi %s169, %s169
              $region43: #{tpu_custom_call.1} parent=39 // loop_header_branch
                %178 = sbr.rel (%p176) target = $region47
              $region44: #{tpu_custom_call.1} parent=39 // loop_body
                %v182 = vld [vmem:[%s180] sm:$0xff]
                %183 = vst [vmem:[%s181] sm:$0xff] %v182
                %v184 = vld [vmem:[%s180 + $0x8] sm:$0xff]
                %185 = vst [vmem:[%s181 + $0x8] sm:$0xff] %v184
                %v186 = vld [vmem:[%s180 + $0x10] sm:$0xff]
                %187 = vst [vmem:[%s181 + $0x10] sm:$0xff] %v186
                %v188 = vld [vmem:[%s180 + $0x18] sm:$0xff]
                %189 = vst [vmem:[%s181 + $0x18] sm:$0xff] %v188
                %v190 = vld [vmem:[%s180 + $0x20] sm:$0xff]
                %191 = vst [vmem:[%s181 + $0x40] sm:$0xff] %v190
                %v192 = vld [vmem:[%s180 + $0x28] sm:$0xff]
                %193 = vst [vmem:[%s181 + $0x48] sm:$0xff] %v192
                %v194 = vld [vmem:[%s180 + $0x30] sm:$0xff]
                %195 = vst [vmem:[%s181 + $0x50] sm:$0xff] %v194
                %v196 = vld [vmem:[%s180 + $0x38] sm:$0xff]
                %197 = vst [vmem:[%s181 + $0x58] sm:$0xff] %v196
              $region45: #{tpu_custom_call.1} parent=39 // loop_footer
                %s179 = sadd.s32 1, %s175
              $region46: #{tpu_custom_call.1} parent=39 // loop_footer_branch
                %174 = sbr.rel target = $region42
              $region47: #{tpu_custom_call.1} parent=39 // loop_exit
                _
            $region40: #{tpu_custom_call.1} parent=35 // pred_fallthru
              _
            // Predicated region
            $region48: #{tpu_custom_call.1} parent=35 // pred_check
              _
            $region49: #{tpu_custom_call.1} parent=35 // pred_check_branch
              %199 = sbr.rel target = $region51
            $region50: #{tpu_custom_call.1} parent=35 // pred_region
              _
            $region51: #{tpu_custom_call.1} parent=35 // pred_fallthru
              _
          $region36: #{tpu_custom_call.1} parent=31 // pred_fallthru
            _
          %200 = vnop
        $region32: #{tpu_custom_call.1} parent=23 // pred_fallthru
          _
      $region24: #{tpu_custom_call.1} parent=5 // pred_fallthru
        _
      %p201 = scmp.le.s32.totalorder 2, %s10
      // Predicated region
      $region52: #{tpu_custom_call.1} parent=5 // pred_check
        %p202 = pneg %p201
      $region53: #{tpu_custom_call.1} parent=5 // pred_check_branch
        %204 = sbr.rel (%p202) target = $region55
      $region54: #{tpu_custom_call.1} parent=5 // pred_region
        %s205 = ssub.s32 %s10, 2
        // Predicated region
        $region56: #{tpu_custom_call.1} parent=54 // pred_check
          %p206 = pneg %p79
        $region57: #{tpu_custom_call.1} parent=54 // pred_check_branch
          %208 = sbr.rel (%p206) target = $region59
        $region58: #{tpu_custom_call.1} parent=54 // pred_region
          %s209 = sand.u32 %s64, 1
          %s210 = sand.u32 %s64, 1
          %s211 = smul.addr %s210, 64
          %s212 = scalar_lea.vmem [#allocation4], %s211
        $region59: #{tpu_custom_call.1} parent=54 // pred_fallthru
          _
      $region55: #{tpu_custom_call.1} parent=5 // pred_fallthru
        _
    $region6: #{tpu_custom_call.1} parent=1 // loop_footer
      %s14 = sadd.s32 1, %s10
    $region7: #{tpu_custom_call.1} parent=1 // loop_footer_branch
      %9 = sbr.rel target = $region3
    $region8: #{tpu_custom_call.1} parent=1 // loop_exit
      _
    %213 = vsyncpa [#allocation3], 1
    %s214 = scalar_lea.sflag [#allocation3], 1
    %215 = vsyncpa %s214, 1

</llo_original>
